<compile_context>
chip_gen: v7x
topology: tpu7x:2x2x1
jax: 0.10.0
libtpu: 0.0.40
codegen_flags: <defaults>
</compile_context>

<pallas_src>
import functools

import jax
import jax.numpy as jnp
from jax.experimental import pallas as pl
from jax.experimental.pallas import tpu as pltpu


def _cdiv(a, b):
    return -(-a // b)


def _round_up(a, b):
    return _cdiv(a, b) * b


def _round_down(a, b):
    return (a // b) * b


def _actquant_kernel(clamp_ref, x_ref, o_ref, *, quant, bitwidth):
    # clamp_ref lives in SMEM as a (1,) float32 scalar (signed, like the torch Parameter).
    clamp_val = clamp_ref[0]
    abs_clamp = jnp.abs(clamp_val)

    x = x_ref[...]

    if quant:
        # Quant path: f32 math for the round, native-dtype I/O.
        xf = x.astype(jnp.float32)
        y = jnp.minimum(jnp.maximum(xf, 0.0), abs_clamp)        # clamp(x, 0, |c|)
        # NOTE: act_scale intentionally uses the *signed* clamp_val (matches torch).
        # NOTE: for bitwidth >= 25, (2**b - 1) is not exactly representable in f32;
        # this matches any f32 torch implementation.
        act_scale = (2.0 ** bitwidth - 1.0) / clamp_val          # scalar
        inv_scale = 1.0 / act_scale                              # scalar recip, once/step
        # Reciprocal-multiply instead of per-element true divide (may differ from
        # torch's round(...)/scale by ~1 ULP, accepted per perf review).
        y = jnp.round(y * act_scale) * inv_scale
        o_ref[...] = y.astype(o_ref.dtype)
    else:
        # Clamp-only path: do max/min natively in the input dtype (exact ops).
        c = abs_clamp.astype(x.dtype)
        zero = jnp.zeros((), x.dtype)
        o_ref[...] = jnp.minimum(jnp.maximum(x, zero), c)


def _chip_config():
    """Per-generation block size / scoped-VMEM settings."""
    kind = ""
    try:
        kind = jax.devices()[0].device_kind.lower()
    except Exception:
        pass
    if "v7" in kind:
        # 6 MiB blocks -> 24 MiB double-buffered in+out footprint; raise scoped VMEM.
        return {"block_bytes": 6 << 20, "vmem_limit_bytes": 40 << 20, "split_cores": True}
    if "v6" in kind:
        return {"block_bytes": 4 << 20, "vmem_limit_bytes": 32 << 20, "split_cores": False}
    # v5e / unknown: stay under the 16 MiB scoped-VMEM default (4 x 2 MiB = 8 MiB).
    return {"block_bytes": 2 << 20, "vmem_limit_bytes": None, "split_cores": False}


def act_quant_forward(x, clamp_val, *, quant=False, bitwidth=32, block_bytes=None):
    """Pallas implementation of ActQuant.forward.

    quant=True corresponds to the quantized branch (eval with self.quant, or
    quantize-during-training); quant=False is the plain clamp branch.
    """
    cfg = _chip_config()
    if block_bytes is None:
        block_bytes = cfg["block_bytes"]
    vmem_limit = cfg["vmem_limit_bytes"]
    split_cores = cfg["split_cores"]

    orig_shape = x.shape
    dtype = x.dtype
    itemsize = jnp.dtype(dtype).itemsize
    n = x.size

    # Minimum sublane count for the dtype's packed (sub, 128) tile:
    # f32 -> 8, bf16 -> 16, int8/fp8 -> 32.
    min_sub = max(8, 32 // itemsize)
    base = min_sub * 128

    clamp_arr = jnp.asarray(clamp_val, dtype=jnp.float32).reshape(1)
    kernel = functools.partial(_actquant_kernel, quant=quant, bitwidth=bitwidth)

    flops_per_elem = 5 if quant else 2
    cost = pl.CostEstimate(
        flops=flops_per_elem * n,
        transcendentals=0,
        bytes_accessed=2 * n * itemsize,
    )

    cp_kwargs = {"dimension_semantics": ("parallel",)}
    if vmem_limit is not None:
        cp_kwargs["vmem_limit_bytes"] = vmem_limit
    compiler_params = pltpu.CompilerParams(**cp_kwargs)

    flat = x.reshape(-1)  # contiguous reshape: free, no HBM pass

    # Prefer a lane-dense 2-D slab when n allows it (common case for conv maps);
    # otherwise stream the flat 1-D array with a Pallas-masked boundary block.
    # Neither path pads or slices, so no extra HBM round-trips.
    lane = None
    for cand in (2048, 1024, 512, 256, 128):
        if n % cand == 0 and (n // cand) >= min_sub:
            lane = cand
            break

    if lane is not None:
        rows = n // lane
        x_in = flat.reshape(rows, lane)
        target_rows = max(min_sub, _round_down(block_bytes // (lane * itemsize), min_sub))
        tile_rows = max(min_sub, _round_down(min(target_rows, rows), min_sub))
        if split_cores and rows > min_sub:
            # Keep grid >= 2 so both v7x TensorCores stream HBM.
            tile_rows = min(tile_rows, max(min_sub, _round_up(_cdiv(rows, 2), min_sub)))
        grid = _cdiv(rows, tile_rows)
        block = (tile_rows, lane)
        idx_map = lambda i: (i, 0)
        out_shape = jax.ShapeDtypeStruct((rows, lane), dtype)
    else:
        x_in = flat
        if n <= base:
            tile = n                      # single whole-array block
        else:
            target = max(base, _round_down(block_bytes // itemsize, base))
            tile = max(base, min(target, _round_down(n, base)))
            if split_cores and n >= 2 * base:
                tile = min(tile, max(base, _round_up(_cdiv(n, 2), base)))
        grid = _cdiv(n, tile)
        block = (tile,)
        idx_map = lambda i: (i,)
        out_shape = jax.ShapeDtypeStruct((n,), dtype)

    out = pl.pallas_call(
        kernel,
        out_shape=out_shape,
        grid_spec=pltpu.PrefetchScalarGridSpec(
            num_scalar_prefetch=0,
            grid=(grid,),
            in_specs=[
                pl.BlockSpec(memory_space=pltpu.MemorySpace.SMEM),  # clamp scalar
                pl.BlockSpec(block, idx_map),                       # activations
            ],
            out_specs=pl.BlockSpec(block, idx_map),
        ),
        compiler_params=compiler_params,
        cost_estimate=cost,
    )(clamp_arr, x_in)

    return out.reshape(orig_shape)


def _reference(x, clamp_val, *, quant, bitwidth):
    # Torch-faithful reference (true divide on the quant path).
    cf = jnp.float32(clamp_val)
    if quant:
        xf = x.astype(jnp.float32)
        y = jnp.minimum(jnp.maximum(xf, 0.0), jnp.abs(cf))
        s = (2.0 ** bitwidth - 1.0) / cf
        y = jnp.round(y * s) / s
        return y.astype(x.dtype)
    c = jnp.abs(cf).astype(x.dtype)
    return jnp.minimum(jnp.maximum(x, jnp.zeros((), x.dtype)), c)


if __name__ == "__main__":
    key = jax.random.PRNGKey(0)
    # clamp_val is a learned Parameter set outside __init__ in the original module;
    # initialize it deterministically here.
    clamp_val = jnp.float32(1.0)
    bitwidth = 4

    # Small NCHW activation tensors, consistent with conv feature maps.
    x_f32 = jax.random.normal(key, (2, 4, 16, 16), dtype=jnp.float32)
    x_bf16 = x_f32.astype(jnp.bfloat16)
    x_ragged = jax.random.normal(jax.random.PRNGKey(1), (3, 5, 7, 11), dtype=jnp.float32)
    x_tiny = jax.random.normal(jax.random.PRNGKey(2), (2, 4, 3, 3), dtype=jnp.float32)

    cases = [
        ("f32 clamp (aligned 2-D path)", x_f32, False),
        ("f32 quant (aligned 2-D path)", x_f32, True),
        ("bf16 clamp (native bf16 path)", x_bf16, False),
        ("bf16 quant (f32 math path)", x_bf16, True),
        ("f32 quant (ragged 1-D masked path)", x_ragged, True),
        ("f32 clamp (tiny whole-array path)", x_tiny, False),
    ]

    for name, xx, q in cases:
        y = act_quant_forward(xx, clamp_val, quant=q, bitwidth=bitwidth)
        jax.block_until_ready(y)
        ref = _reference(xx, clamp_val, quant=q, bitwidth=bitwidth)
        assert y.dtype == xx.dtype and y.shape == xx.shape, name
        tol = 1e-2 if xx.dtype == jnp.bfloat16 else 1e-6
        assert jnp.allclose(y.astype(jnp.float32), ref.astype(jnp.float32),
                            atol=tol), f"{name} mismatch"

    # TODO(synk): the PyTorch forward's print()/stat-plotting side effects and the
    # Round straight-through-estimator backward have no kernel equivalent and are
    # intentionally omitted (forward-only).
    print("KERNEL_OK")
</pallas_src>

<mosaic_0001>
module attributes {stable_mosaic.version = 11 : i64} {
  func.func @_actquant_kernel(%arg0: i32, %arg1: memref<1xf32, #tpu.memory_space<smem>>, %arg2: memref<8x256xf32, #tpu.memory_space<vmem>>, %arg3: memref<8x256xf32, #tpu.memory_space<vmem>>) attributes {dimension_semantics = [#tpu.dimension_semantics<parallel>], iteration_bounds = array<i64: 1>, scalar_prefetch = 0 : i64, scratch_operands = 0 : i64, tpu.core_type = #tpu.core_type<tc>, window_params = [{transform_indices = @transform_0, window_bounds = array<i64: 1>}, {transform_indices = @transform_1, window_bounds = array<i64: 8, 256>}, {transform_indices = @transform_2, window_bounds = array<i64: 8, 256>}]} {
    %c0 = arith.constant 0 : index
    %0 = memref.load %arg1[%c0] : memref<1xf32, #tpu.memory_space<smem>>
    %1 = math.absf %0 : f32
    %c0_0 = arith.constant 0 : index
    %c0_1 = arith.constant 0 : index
    %2 = vector.load %arg2[%c0_0, %c0_1] : memref<8x256xf32, #tpu.memory_space<vmem>>, vector<8x256xf32>
    %cst = arith.constant 0.000000e+00 : f32
    %3 = vector.broadcast %cst : f32 to vector<8x256xf32>
    %4 = arith.maximumf %2, %3 : vector<8x256xf32>
    %5 = vector.broadcast %1 : f32 to vector<8x256xf32>
    %6 = arith.minimumf %4, %5 : vector<8x256xf32>
    %c0_2 = arith.constant 0 : index
    %c0_3 = arith.constant 0 : index
    %7 = vector.load %arg3[%c0_2, %c0_3] : memref<8x256xf32, #tpu.memory_space<vmem>>, vector<8x256xf32>
    tpu.vector_store %arg3[%c0_2, %c0_3], %6 {strides = array<i32>} : memref<8x256xf32, #tpu.memory_space<vmem>>, vector<8x256xf32>,
    return
  }
  func.func @transform_0(%arg0: i32) -> i32 {
    %c0_i32 = arith.constant 0 : i32
    %c0_i32_0 = arith.constant 0 : i32
    return %c0_i32 : i32
  }
  func.func @transform_1(%arg0: i32) -> (i32, i32) {
    %c0_i32 = arith.constant 0 : i32
    %c0_i32_0 = arith.constant 0 : i32
    return %arg0, %c0_i32 : i32, i32
  }
  func.func @transform_2(%arg0: i32) -> (i32, i32) {
    %c0_i32 = arith.constant 0 : i32
    %c0_i32_0 = arith.constant 0 : i32
    return %arg0, %c0_i32 : i32, i32
  }
}

</mosaic_0001>

<llo_original>
// kernel: tpu_custom_call.1
$region0: #{tpu_custom_call.1}
  #allocation0 [shape = 'u32[]', space=smem, size = 0x4, offset = 0x4, fixed_abs, tag = 'smem constant byte address 0x4 - core index']
  #allocation1 [shape = 'u32[144,128]{1,0:T(1,128)}', space=vmem, size = 0x12000, scoped, tag = 'internal scratch']
  #allocation2 [shape = 'f32[1]{0:T(128)S(6)}', space=smem, size = 0x200, scoped, tag = 'scoped memory for tpu_custom_call.1']
  %s0 = inlined_call_operand.<no memory space> [shape: f32[1], index: 0, kind: input, shape index: {}]
  %s1 = inlined_call_operand.hbm [shape: f32[8,256], index: 1, kind: input, shape index: {}]
  %s2 = inlined_call_operand.hbm [shape: f32[8,256], index: 2, kind: output, shape index: {}]
  %s3 = sld [smem:[#allocation0]]
  $region22: #{tpu_custom_call.1} parent=0
    _
  %s5 = ssub.s32 1, %s3
  %s6 = scalar_select 0, %s5, %s3
  %7 = sst [smem:[#allocation2]] %s0
  $region1: #{tpu_custom_call.1} parent=0
    #allocation3 [shape = 'u8[8192]{0}', space=vmem, size = 0x2000, scoped, tag = 'input window, operand 1, single buffered']
    #allocation4 [shape = 's32[1]{0}', space=sflag, size = 0x4, scoped, tag = 'scoped memory for tpu_custom_call.1']
    #allocation5 [shape = 's32[1]{0}', space=sflag, size = 0x4, scoped, tag = 'scoped memory for tpu_custom_call.1']
    #allocation6 [shape = 'u8[8192]{0}', space=vmem, size = 0x2000, scoped, tag = 'output window, operand 0, single buffered']
    %8 = vsyncpa [#allocation4], 0
    %9 = vsyncpa [#allocation5], 0
    // Predicated region
    $region2: #{tpu_custom_call.1} parent=1 // pred_check
      _
    $region3: #{tpu_custom_call.1} parent=1 // pred_check_branch
      %11 = sbr.rel (0) target = $region5
    $region4: #{tpu_custom_call.1} parent=1 // pred_region
      _
    $region5: #{tpu_custom_call.1} parent=1 // pred_fallthru
      _
    // Predicated region
    $region6: #{tpu_custom_call.1} parent=1 // pred_check
      _
    $region7: #{tpu_custom_call.1} parent=1 // pred_check_branch
      %13 = sbr.rel (0) target = $region9
    $region8: #{tpu_custom_call.1} parent=1 // pred_region
      %s15 = ssub.s32 256, 256
      %16 = vsyncadd [#allocation4], %s15
      %s18 = sshll.u32 [#allocation3], 4
      %s19 = int_to_ptr.vmem [resolvable:$true] %s18
      %21 = dma.hbm_to_vmem [thread:$0]  %s1, 256, %s19, [#allocation4]
    $region9: #{tpu_custom_call.1} parent=1 // pred_fallthru
      _
    // Predicated region
    $region10: #{tpu_custom_call.1} parent=1 // pred_check
      _
    $region11: #{tpu_custom_call.1} parent=1 // pred_check_branch
      %23 = sbr.rel (0) target = $region13
    $region12: #{tpu_custom_call.1} parent=1 // pred_region
      %24 = dma.done [#allocation4], 256
    $region13: #{tpu_custom_call.1} parent=1 // pred_fallthru
      _
    %s25 = sld [smem:[#allocation2]]
    %s26 = sand.u32 2147483647, %s25
    %v27 = vld [vmem:[#allocation3] sm:$0xff]
    %v28 = vld [vmem:[#allocation3 + $0x8] sm:$0xff]
    %v29 = vmax.f32 %v27, 0.0
    %v30 = vmax.f32 %v28, 0.0
    %v31 = vstv %s26
    %v32 = vmin.f32 %v29, %v31
    %v33 = vmin.f32 %v30, %v31
    %34 = vst [vmem:[#allocation6] sm:$0xff] %v32
    %35 = vst [vmem:[#allocation6 + $0x8] sm:$0xff] %v33
    // Predicated region
    $region14: #{tpu_custom_call.1} parent=1 // pred_check
      _
    $region15: #{tpu_custom_call.1} parent=1 // pred_check_branch
      %37 = sbr.rel (0) target = $region17
    $region16: #{tpu_custom_call.1} parent=1 // pred_region
      %s39 = ssub.s32 256, 256
      %40 = vsyncadd [#allocation5], %s39
      %s42 = sshll.u32 [#allocation6], 4
      %s43 = int_to_ptr.vmem [resolvable:$true] %s42
      %45 = dma.vmem_to_hbm [thread:$0]  %s43, 256, %s2, [#allocation5]
    $region17: #{tpu_custom_call.1} parent=1 // pred_fallthru
      _
    // Predicated region
    $region18: #{tpu_custom_call.1} parent=1 // pred_check
      _
    $region19: #{tpu_custom_call.1} parent=1 // pred_check_branch
      %47 = sbr.rel (0) target = $region21
    $region20: #{tpu_custom_call.1} parent=1 // pred_region
      %48 = dma.done [#allocation5], 256
    $region21: #{tpu_custom_call.1} parent=1 // pred_fallthru
      _
    %49 = vsyncpa [#allocation4], 1
    %50 = vsyncpa [#allocation5], 1

</llo_original>
